<compile_context>
chip_gen: v6e
topology: v6e:2x2x1
jax: 0.10.0
libtpu: 0.0.40
codegen_flags: <defaults>
</compile_context>

<pallas_src>
import jax
import jax.numpy as jnp
from jax.experimental import pallas as pl
from jax.experimental.pallas import tpu as pltpu

_LANE = 128
# Below ~1 MiB of f32 the pallas_call fixed cost beats any pipelining benefit.
_MIN_PALLAS_ELEMS = 1 << 18
_VMEM_LIMIT_BYTES = 48 << 20  # <= v7x's 64 MiB physical; plenty on v5e/v6e (128 MiB)


def _str_kernel(f_ref, i_ref, o_ref):
    f = f_ref[...]
    s = jax.nn.sigmoid(i_ref[...])  # EUP (transcendental slot)
    # Soft-threshold identity: sign(f)*relu(|f|-s) == f - clip(f, -s, s)
    # (valid because s = sigmoid(.) > 0).  ~3 VALU ops per element.
    o_ref[...] = f - jnp.clip(f, -s, s)


def _target_block_bytes() -> int:
    """Per-operand block-size target, generation aware."""
    try:
        info = pltpu.get_tpu_info()
        vmem = getattr(info, "vmem_capacity_bytes", None)
        if vmem is not None and vmem <= (64 << 20):
            # v7x: 64 MiB VMEM, 3.2 TB/s HBM -> bigger blocks to amortize the
            # ~0.35us per-step overhead; 3 operands x 2 buffers x 6 MiB = 36 MiB.
            return 6 << 20
    except Exception:
        pass
    # v5e / v6e (128 MiB physical VMEM): 3 x 2 x 4 MiB = 24 MiB live.
    return 4 << 20


def _choose_layout(n: int, itemsize: int, target_bytes: int):
    """Pick (rows, lane_width, block_rows) for a lane-dense 2D slab.

    `n` must be a multiple of 128 (caller guarantees it).
    """
    assert n % _LANE == 0 and n > 0

    # Widest lane dimension (multiple of 128) that divides the flat size.
    lane_w = _LANE
    for cand in (4096, 2048, 1024, 512, 256):
        if n % cand == 0:
            lane_w = cand
            break
    rows = n // lane_w

    # Sublane granularity: 8 for 32-bit, 16 for bf16, 32 for int8.
    bits = itemsize * 8
    min_sub = max(8, (32 // bits) * 8)

    target_rows = max(min_sub, target_bytes // (lane_w * itemsize))
    target_rows = max(min_sub, (target_rows // min_sub) * min_sub)

    if rows <= target_rows:
        if rows > min_sub:
            # Split a would-be single block into 2 so both v7x TensorCores get
            # work (costs only one extra ~0.35us step on single-TC chips).
            half = (rows + 1) // 2
            block_rows = min(((half + min_sub - 1) // min_sub) * min_sub, rows)
        else:
            block_rows = rows  # full extent -> always legal
    else:
        block_rows = target_rows
        # Prefer a block size near the target that divides rows exactly (no
        # ragged masked-store final block), preferring an even grid count.
        best = None
        for delta in range(0, 9):
            for cand in (target_rows - delta * min_sub,
                         target_rows + delta * min_sub):
                if cand < min_sub or cand > rows:
                    continue
                if rows % cand == 0:
                    g = rows // cand
                    score = (g % 2 != 0, delta)  # even grid first, then closeness
                    if best is None or score < best[0]:
                        best = (score, cand)
        if best is not None:
            block_rows = best[1]
    return rows, lane_w, block_rows


def _str_pallas_flat(f_flat: jax.Array, i_flat: jax.Array) -> jax.Array:
    """Run the kernel on a flat, 128-aligned slab. Returns flat output."""
    n = f_flat.shape[0]
    dtype = f_flat.dtype
    itemsize = jnp.dtype(dtype).itemsize

    rows, lane_w, block_rows = _choose_layout(n, itemsize, _target_block_bytes())
    f2d = f_flat.reshape(rows, lane_w)
    i2d = i_flat.reshape(rows, lane_w)

    grid = (pl.cdiv(rows, block_rows),)
    spec = pl.BlockSpec((block_rows, lane_w), lambda r: (r, 0))

    cost = pl.CostEstimate(
        flops=3 * n,                       # clip (max,min) + sub
        transcendentals=n,                 # sigmoid
        bytes_accessed=3 * n * itemsize,   # 2 reads + 1 write
    )

    out2d = pl.pallas_call(
        _str_kernel,
        out_shape=jax.ShapeDtypeStruct((rows, lane_w), dtype),
        grid=grid,
        in_specs=[spec, spec],
        out_specs=spec,
        compiler_params=pltpu.CompilerParams(
            dimension_semantics=("parallel",),
            vmem_limit_bytes=_VMEM_LIMIT_BYTES),
        cost_estimate=cost,
    )(f2d, i2d)
    return out2d.reshape(-1)


def str_transform_ref(feature, indicator):
    ind = jax.nn.sigmoid(indicator)
    return jnp.sign(feature) * jnp.maximum(jnp.abs(feature) - ind, 0.0)


def str_transform(feature: jax.Array, indicator: jax.Array,
                  *, force_pallas: bool = False) -> jax.Array:
    """Elementwise soft-threshold: sign(f) * relu(|f| - sigmoid(ind))."""
    assert feature.shape == indicator.shape, "expects matching shapes"
    orig_shape = feature.shape
    n = feature.size

    # Tiny inputs: fused XLA elementwise beats the pallas_call fixed cost.
    if n < _LANE or (not force_pallas and n < _MIN_PALLAS_ELEMS):
        return str_transform_ref(feature, indicator)

    f_flat = feature.reshape(-1)
    i_flat = indicator.reshape(-1)

    tail = n % _LANE
    n_main = n - tail

    if tail == 0:
        # Common case: exact lane-aligned view, zero wrapper-side copies.
        out_flat = _str_pallas_flat(f_flat, i_flat)
    else:
        # Kernel on the 128-aligned prefix; <128-element tail in plain XLA.
        out_main = _str_pallas_flat(f_flat[:n_main], i_flat[:n_main])
        out_tail = str_transform_ref(f_flat[n_main:], i_flat[n_main:])
        out_flat = jnp.concatenate([out_main, out_tail])

    return out_flat.reshape(orig_shape)


if __name__ == "__main__":
    key = jax.random.PRNGKey(0)
    kf, ki, kf2, ki2, kf3, ki3 = jax.random.split(key, 6)

    # Primary small NCHW example (module is shape-agnostic / elementwise).
    feature = jax.random.normal(kf, (2, 4, 16, 16), dtype=jnp.float32)
    indicator = jax.random.normal(ki, (2, 4, 16, 16), dtype=jnp.float32)
    ref = str_transform_ref(feature, indicator)

    # Force the Pallas path at this small size to exercise the kernel.
    out = jax.block_until_ready(str_transform(feature, indicator, force_pallas=True))
    assert out.shape == feature.shape
    assert jnp.allclose(out, ref, atol=1e-6, rtol=1e-6)

    # Default dispatch (small-input fallback to fused XLA).
    out_d = jax.block_until_ready(str_transform(feature, indicator))
    assert jnp.allclose(out_d, ref, atol=1e-6, rtol=1e-6)

    # Size not a multiple of 128 -> aligned-prefix kernel + XLA tail.
    f2 = jax.random.normal(kf2, (3, 5, 7, 11), dtype=jnp.float32)
    i2 = jax.random.normal(ki2, (3, 5, 7, 11), dtype=jnp.float32)
    out2 = jax.block_until_ready(str_transform(f2, i2, force_pallas=True))
    assert jnp.allclose(out2, str_transform_ref(f2, i2), atol=1e-6, rtol=1e-6)

    # Larger case: multi-step grid (both v7x cores busy), default dispatch.
    f3 = jax.random.normal(kf3, (8, 64, 32, 32), dtype=jnp.float32)
    i3 = jax.random.normal(ki3, (8, 64, 32, 32), dtype=jnp.float32)
    out3 = jax.block_until_ready(str_transform(f3, i3))
    assert jnp.allclose(out3, str_transform_ref(f3, i3), atol=1e-6, rtol=1e-6)

    print("KERNEL_OK")
</pallas_src>

<mosaic_0001>
module attributes {stable_mosaic.version = 11 : i64} {
  func.func @_str_kernel(%arg0: i32, %arg1: memref<1x2048xf32, #tpu.memory_space<vmem>>, %arg2: memref<1x2048xf32, #tpu.memory_space<vmem>>, %arg3: memref<1x2048xf32, #tpu.memory_space<vmem>>) attributes {dimension_semantics = [#tpu.dimension_semantics<parallel>], iteration_bounds = array<i64: 1>, scalar_prefetch = 0 : i64, scratch_operands = 0 : i64, tpu.core_type = #tpu.core_type<tc>, window_params = [{transform_indices = @transform_0, window_bounds = array<i64: 1, 2048>}, {transform_indices = @transform_1, window_bounds = array<i64: 1, 2048>}, {transform_indices = @transform_2, window_bounds = array<i64: 1, 2048>}]} {
    %c0 = arith.constant 0 : index
    %c0_0 = arith.constant 0 : index
    %0 = vector.load %arg1[%c0, %c0_0] : memref<1x2048xf32, #tpu.memory_space<vmem>>, vector<1x2048xf32>
    %c0_1 = arith.constant 0 : index
    %c0_2 = arith.constant 0 : index
    %1 = vector.load %arg2[%c0_1, %c0_2] : memref<1x2048xf32, #tpu.memory_space<vmem>>, vector<1x2048xf32>
    %2 = arith.negf %1 : vector<1x2048xf32>
    %3 = math.exp %2 : vector<1x2048xf32>
    %cst = arith.constant 1.000000e+00 : f32
    %4 = vector.broadcast %cst : f32 to vector<1x2048xf32>
    %5 = arith.addf %4, %3 : vector<1x2048xf32>
    %6 = arith.divf %4, %5 : vector<1x2048xf32>
    %cst_3 = arith.constant 0.000000e+00 : f32
    %7 = vector.broadcast %cst_3 : f32 to vector<1x2048xf32>
    %8 = arith.subf %7, %6 : vector<1x2048xf32>
    %9 = arith.maximumf %8, %0 : vector<1x2048xf32>
    %10 = arith.minimumf %6, %9 : vector<1x2048xf32>
    %11 = arith.subf %0, %10 : vector<1x2048xf32>
    %c0_4 = arith.constant 0 : index
    %c0_5 = arith.constant 0 : index
    %12 = vector.load %arg3[%c0_4, %c0_5] : memref<1x2048xf32, #tpu.memory_space<vmem>>, vector<1x2048xf32>
    tpu.vector_store %arg3[%c0_4, %c0_5], %11 {strides = array<i32>} : memref<1x2048xf32, #tpu.memory_space<vmem>>, vector<1x2048xf32>,
    return
  }
  func.func @transform_0(%arg0: i32) -> (i32, i32) {
    %c0_i32 = arith.constant 0 : i32
    %c0_i32_0 = arith.constant 0 : i32
    return %arg0, %c0_i32 : i32, i32
  }
  func.func @transform_1(%arg0: i32) -> (i32, i32) {
    %c0_i32 = arith.constant 0 : i32
    %c0_i32_0 = arith.constant 0 : i32
    return %arg0, %c0_i32 : i32, i32
  }
  func.func @transform_2(%arg0: i32) -> (i32, i32) {
    %c0_i32 = arith.constant 0 : i32
    %c0_i32_0 = arith.constant 0 : i32
    return %arg0, %c0_i32 : i32, i32
  }
}

</mosaic_0001>

<llo_original>
// kernel: tpu_custom_call.1
$region0: #{tpu_custom_call.1}
  #allocation0 [shape = 'u32[]', space=smem, size = 0x4, offset = 0x4, fixed_abs, tag = 'smem constant byte address 0x4 - core index']
  #allocation1 [shape = 'u32[144,128]{1,0:T(1,128)}', space=vmem, size = 0x12000, scoped, tag = 'internal scratch']
  %s0 = inlined_call_operand.hbm [shape: f32[1,2048], index: 0, kind: input, shape index: {}]
  %s1 = inlined_call_operand.hbm [shape: f32[1,2048], index: 1, kind: input, shape index: {}]
  %s2 = inlined_call_operand.hbm [shape: f32[1,2048], index: 2, kind: output, shape index: {}]
  %s3 = sld [smem:[#allocation0]]
  $region26: #{tpu_custom_call.1} parent=0
    _
  %s5 = ssub.s32 1, %s3
  %s6 = scalar_select 0, %s5, %s3
  $region1: #{tpu_custom_call.1} parent=0
    #allocation2 [shape = 'u8[8192]{0}', space=vmem, size = 0x2000, scoped, tag = 'input window, operand 0, single buffered']
    #allocation3 [shape = 's32[1]{0}', space=sflag, size = 0x4, scoped, tag = 'scoped memory for tpu_custom_call.1']
    #allocation4 [shape = 's32[1]{0}', space=sflag, size = 0x4, scoped, tag = 'scoped memory for tpu_custom_call.1']
    #allocation5 [shape = 'u8[8192]{0}', space=vmem, size = 0x2000, scoped, tag = 'input window, operand 1, single buffered']
    #allocation6 [shape = 's32[1]{0}', space=sflag, size = 0x4, scoped, tag = 'scoped memory for tpu_custom_call.1']
    #allocation7 [shape = 'u8[8192]{0}', space=vmem, size = 0x2000, scoped, tag = 'output window, operand 0, single buffered']
    %7 = vsyncpa [#allocation3], 0
    %8 = vsyncpa [#allocation6], 0
    %9 = vsyncpa [#allocation4], 0
    // Predicated region
    $region2: #{tpu_custom_call.1} parent=1 // pred_check
      _
    $region3: #{tpu_custom_call.1} parent=1 // pred_check_branch
      %11 = sbr.rel (0) target = $region5
    $region4: #{tpu_custom_call.1} parent=1 // pred_region
      %s13 = ssub.s32 256, 256
      %14 = vsyncadd [#allocation3], %s13
      %s16 = sshll.u32 [#allocation2], 4
      %s17 = int_to_ptr.vmem [resolvable:$true] %s16
      %19 = dma.hbm_to_vmem [thread:$0]  %s0, 256, %s17, [#allocation3]
    $region5: #{tpu_custom_call.1} parent=1 // pred_fallthru
      _
    // Predicated region
    $region6: #{tpu_custom_call.1} parent=1 // pred_check
      _
    $region7: #{tpu_custom_call.1} parent=1 // pred_check_branch
      %21 = sbr.rel (0) target = $region9
    $region8: #{tpu_custom_call.1} parent=1 // pred_region
      %s23 = ssub.s32 256, 256
      %24 = vsyncadd [#allocation6], %s23
      %s26 = sshll.u32 [#allocation5], 4
      %s27 = int_to_ptr.vmem [resolvable:$true] %s26
      %29 = dma.hbm_to_vmem [thread:$0]  %s1, 256, %s27, [#allocation6]
    $region9: #{tpu_custom_call.1} parent=1 // pred_fallthru
      _
    // Predicated region
    $region10: #{tpu_custom_call.1} parent=1 // pred_check
      _
    $region11: #{tpu_custom_call.1} parent=1 // pred_check_branch
      %31 = sbr.rel (0) target = $region13
    $region12: #{tpu_custom_call.1} parent=1 // pred_region
      %32 = dma.done [#allocation3], 256
    $region13: #{tpu_custom_call.1} parent=1 // pred_fallthru
      _
    // Predicated region
    $region14: #{tpu_custom_call.1} parent=1 // pred_check
      _
    $region15: #{tpu_custom_call.1} parent=1 // pred_check_branch
      %34 = sbr.rel (0) target = $region17
    $region16: #{tpu_custom_call.1} parent=1 // pred_region
      %35 = dma.done [#allocation6], 256
    $region17: #{tpu_custom_call.1} parent=1 // pred_fallthru
      _
    %v36 = vld [vmem:[#allocation2] sm:$0xff]
    %v37 = vld [vmem:[#allocation2 + $0x8] sm:$0xff]
    %v38 = vld [vmem:[#allocation5] sm:$0xff]
    %v39 = vld [vmem:[#allocation5 + $0x8] sm:$0xff]
    %v40 = vxor.u32 %v38, 2147483648
    %v41 = vxor.u32 %v39, 2147483648
    %v42 = vmul.f32 %v40, 1.442695
    %v43 = vpow.pop %v42
    %v44 = vmul.f32 %v41, 1.442695
    %v45 = vpow.pop %v44
    %v46 = vadd.f32 %v43, 1.0
    %v47 = vadd.f32 %v45, 1.0
    %v48 = vrcp.pop %v46
    %v49 = vmul.f32 1.0, %v48
    %v50 = vrcp.pop %v47
    %v51 = vmul.f32 1.0, %v50
    %v52 = vsub.f32 0.0, %v49
    %v53 = vsub.f32 0.0, %v51
    %v54 = vmax.f32 %v52, %v36
    %v55 = vmax.f32 %v53, %v37
    %v56 = vmin.f32 %v49, %v54
    %v57 = vmin.f32 %v51, %v55
    %v58 = vsub.f32 %v36, %v56
    %v59 = vsub.f32 %v37, %v57
    %60 = vst [vmem:[#allocation7] sm:$0xff] %v58
    %61 = vst [vmem:[#allocation7 + $0x8] sm:$0xff] %v59
    // Predicated region
    $region18: #{tpu_custom_call.1} parent=1 // pred_check
      _
    $region19: #{tpu_custom_call.1} parent=1 // pred_check_branch
      %63 = sbr.rel (0) target = $region21
    $region20: #{tpu_custom_call.1} parent=1 // pred_region
      %s65 = ssub.s32 256, 256
      %66 = vsyncadd [#allocation4], %s65
      %s68 = sshll.u32 [#allocation7], 4
      %s69 = int_to_ptr.vmem [resolvable:$true] %s68
      %71 = dma.vmem_to_hbm [thread:$0]  %s69, 256, %s2, [#allocation4]
    $region21: #{tpu_custom_call.1} parent=1 // pred_fallthru
      _
    // Predicated region
    $region22: #{tpu_custom_call.1} parent=1 // pred_check
      _
    $region23: #{tpu_custom_call.1} parent=1 // pred_check_branch
      %73 = sbr.rel (0) target = $region25
    $region24: #{tpu_custom_call.1} parent=1 // pred_region
      %74 = dma.done [#allocation4], 256
    $region25: #{tpu_custom_call.1} parent=1 // pred_fallthru
      _
    %75 = vsyncpa [#allocation3], 1
    %76 = vsyncpa [#allocation6], 1
    %77 = vsyncpa [#allocation4], 1

</llo_original>
